<compile_context>
chip_gen: v5e
topology: v5e:2x2
jax: 0.10.0
libtpu: 0.0.40
codegen_flags: <defaults>
</compile_context>

<pallas_src>
import functools
import math

import jax
import jax.numpy as jnp
from jax.experimental import pallas as pl
from jax.experimental.pallas import tpu as pltpu


def _round_up(x, m):
    return ((x + m - 1) // m) * m


def _logit(p):
    """Inverse sigmoid; sigmoid(x) > p  <=>  x > logit(p) for p in (0, 1)."""
    if p <= 0.0:
        return -float("inf")
    if p >= 1.0:
        return float("inf")
    return math.log(p / (1.0 - p))


def _fcos_level_kernel(logit_thresh, min_size, hw_valid, tile,
                       # scalar-prefetch (SMEM):
                       imgsz_ref,     # (N, 2) int32, rows = (h, w)
                       # inputs (VMEM blocks, one (image, HW-tile) per step):
                       cls_ref,       # (1, C, T) native dtype
                       reg_ref,       # (1, 4, T) native dtype
                       ctr_ref,       # (1, 1, T) native dtype
                       loc_ref,       # (4, T)    f32  rows = (x, y, x, y)
                       # outputs (VMEM):
                       scores_ref,    # (1, C, T) f32
                       boxes_ref,     # (1, 4, T) f32
                       cand_ref,      # (1, C, T) i8
                       keep_ref,      # (1, 1, T) i8
                       count_ref):    # (1, 1, 1) i32 per-(image, tile) count
    i = pl.program_id(0)          # image index
    t = pl.program_id(1)          # HW tile index

    # Ragged-tail lane mask.  The host no longer pads HW, so the trailing
    # lanes of the last tile hold unspecified data; OOB output lanes are
    # dropped by Pallas, but cand / count / keep / scores must be masked
    # here so garbage never leaks into pre_nms_top_n or downstream masks.
    lane = jax.lax.broadcasted_iota(jnp.int32, (1, tile), 1)
    valid = (t * tile + lane) < hw_valid                         # (1, T) bool

    # force_fp32 semantics: cast AFTER the load (free VPU work in VMEM)
    # instead of a separate materializing HBM pass in the wrapper.
    cls = cls_ref[0].astype(jnp.float32)                         # (C, T)
    ctr = ctr_ref[0].astype(jnp.float32)                         # (1, T)

    # Candidate mask in logit space (sigmoid is monotone): saves one EUP
    # (sigmoid) pass over the (C, T) block.
    cand = (cls > logit_thresh) & valid                          # (C, T)
    cand_ref[...] = cand.astype(jnp.int8)[None]

    # Centerness-weighted scores:
    #   sqrt(sigmoid(cls) * sigmoid(ctr)) == rsqrt((1+exp(-cls))*(1+exp(-ctr)))
    # one fewer transcendental pass per element than sigmoid+sigmoid+sqrt.
    denom = (1.0 + jnp.exp(-cls)) * (1.0 + jnp.exp(-ctr))
    scores_ref[...] = jnp.where(valid, jax.lax.rsqrt(denom), 0.0)[None]

    # Per-(image, HW-tile) partial candidate count.  One output block per grid
    # step (no resident accumulator) keeps both grid axes "parallel" so the
    # HW-tile axis can shard across TensorCores on v7x; the tiny sum + clamp
    # happens in the wrapper.
    count_ref[...] = jnp.sum(cand.astype(jnp.int32)).reshape(1, 1, 1)

    # Fused box decode: rows of `boxes` are (x1, y1, x2, y2).
    reg = reg_ref[0].astype(jnp.float32)                         # (4, T)
    loc4 = loc_ref[...]                                          # (4, T) (x,y,x,y)
    row = jax.lax.broadcasted_iota(jnp.int32, (4, 1), 0)
    sign = jnp.where(row < 2, -1.0, 1.0)                         # (4, 1)
    h = imgsz_ref[i, 0].astype(jnp.float32)
    w = imgsz_ref[i, 1].astype(jnp.float32)
    # clip_to_image with TO_REMOVE = 1: upper bounds (w-1, h-1, w-1, h-1).
    bound = jnp.where((row % 2) == 0, w - 1.0, h - 1.0)          # (4, 1)
    boxes = jnp.clip(loc4 + sign * reg, 0.0, bound)              # (4, T)
    boxes = jnp.where(valid, boxes, 0.0)                         # inert tail
    boxes_ref[...] = boxes[None]

    x1 = boxes[0:1, :]
    y1 = boxes[1:2, :]
    x2 = boxes[2:3, :]
    y2 = boxes[3:4, :]
    keep = (y2 > y1) & (x2 > x1)                                 # remove_empty
    # remove_small_boxes with BoxMode.convert(XYXY->XYWH): w = x2-x1,
    # h = y2-y1 (no TO_REMOVE offset), matching the reference module.
    keep = keep & ((x2 - x1) >= min_size) & ((y2 - y1) >= min_size)
    keep_ref[...] = (keep & valid).astype(jnp.int8)[None]


def fcos_level_pallas(locations, box_cls, box_regression, centerness,
                      image_sizes, *, pre_nms_thresh, pre_nms_top_n, min_size,
                      tile_hw=2048):
    """Dense hot path of forward_for_single_feature_map (channel-major)."""
    N, C, H, W = box_cls.shape
    HW = H * W

    # Lane tile T: multiple of 128 with T <= HW so no host-side padding of the
    # big arrays is ever needed; the ragged tail is masked in-kernel.  Only
    # genuinely tiny levels (HW < 128) get a trivial pad to one lane tile.
    if HW >= 128:
        T = 128 * min(max(1, int(tile_hw) // 128), HW // 128)
        HW_in = HW
        pad = 0
    else:
        T = 128
        HW_in = 128
        pad = 128 - HW
    n_tiles = pl.cdiv(HW_in, T)

    # Free reshapes only — no materializing casts or pads for the big arrays.
    cls = box_cls.reshape(N, C, HW)
    reg = box_regression.reshape(N, 4, HW)
    ctr = centerness.reshape(N, 1, HW)
    loc_t = locations.astype(jnp.float32).T                      # (2, HW) = (x; y)
    loc4 = jnp.concatenate([loc_t, loc_t], axis=0)               # (4, HW) = (x,y,x,y)
    imgsz = image_sizes.astype(jnp.int32)                        # (N, 2)

    if pad:  # tiny level only (HW < 128): negligible traffic, masked in-kernel
        cls = jnp.pad(cls, ((0, 0), (0, 0), (0, pad)))
        reg = jnp.pad(reg, ((0, 0), (0, 0), (0, pad)))
        ctr = jnp.pad(ctr, ((0, 0), (0, 0), (0, pad)))
        loc4 = jnp.pad(loc4, ((0, 0), (0, pad)))

    kernel = functools.partial(_fcos_level_kernel,
                               float(_logit(float(pre_nms_thresh))),
                               float(min_size),
                               int(HW),      # valid HW for in-kernel masking
                               int(T))

    grid_spec = pltpu.PrefetchScalarGridSpec(
        num_scalar_prefetch=1,
        grid=(N, n_tiles),
        in_specs=[
            pl.BlockSpec((1, C, T), lambda i, t, sz: (i, 0, t)),
            pl.BlockSpec((1, 4, T), lambda i, t, sz: (i, 0, t)),
            pl.BlockSpec((1, 1, T), lambda i, t, sz: (i, 0, t)),
            pl.BlockSpec((4, T),    lambda i, t, sz: (0, t)),
        ],
        out_specs=[
            pl.BlockSpec((1, C, T), lambda i, t, sz: (i, 0, t)),
            pl.BlockSpec((1, 4, T), lambda i, t, sz: (i, 0, t)),
            pl.BlockSpec((1, C, T), lambda i, t, sz: (i, 0, t)),
            pl.BlockSpec((1, 1, T), lambda i, t, sz: (i, 0, t)),
            # per-(image, tile) partial count, one (1,1,1) block per step
            pl.BlockSpec((1, 1, 1),
                         lambda i, t, sz: (i * n_tiles + t, 0, 0)),
        ],
    )
    out_shapes = (
        jax.ShapeDtypeStruct((N, C, HW_in), jnp.float32),   # sqrt(cls*ctr) scores
        jax.ShapeDtypeStruct((N, 4, HW_in), jnp.float32),   # decoded, clipped boxes
        jax.ShapeDtypeStruct((N, C, HW_in), jnp.int8),      # candidate mask
        jax.ShapeDtypeStruct((N, 1, HW_in), jnp.int8),      # keep mask
        jax.ShapeDtypeStruct((N * n_tiles, 1, 1), jnp.int32),  # partial counts
    )
    scores, boxes, cand, keep, counts = pl.pallas_call(
        kernel,
        grid_spec=grid_spec,
        out_shape=out_shapes,
        compiler_params=pltpu.CompilerParams(
            dimension_semantics=("parallel", "parallel")),
    )(imgsz, cls, reg, ctr, loc4)

    if pad:  # tiny-level case only: slice the single padded lane tile back
        scores = scores[:, :, :HW]
        boxes = boxes[:, :, :HW]
        cand = cand[:, :, :HW]
        keep = keep[:, :, :HW]

    # Clamped pre_nms_top_n from the per-tile partial counts (tiny reduce).
    topn = jnp.minimum(counts.reshape(N, n_tiles).sum(axis=1),
                       jnp.int32(pre_nms_top_n)).astype(jnp.int32)

    # Channel-major dense outputs, exact HW on the location axis.
    return {
        "scores": scores,                        # (N, C, HW) f32
        "boxes": boxes,                          # (N, 4, HW) f32
        "candidate_mask": cand,                  # (N, C, HW) int8 (nonzero == True)
        "keep_mask": keep.reshape(N, HW),        # (N, HW) int8
        "pre_nms_top_n": topn,                   # (N,) int32
        "num_locations": HW,
    }


class FCOSPostProcessorPallas:
    """JAX/Pallas version of FCOSPostProcessor (dense portion)."""

    def __init__(self, pre_nms_thresh, pre_nms_top_n, nms_thresh,
                 fpn_post_nms_top_n, min_size, num_classes,
                 bbox_aug_enabled=False, tile_hw=2048):
        self.pre_nms_thresh = pre_nms_thresh
        self.pre_nms_top_n = pre_nms_top_n
        self.nms_thresh = nms_thresh
        self.fpn_post_nms_top_n = fpn_post_nms_top_n
        self.min_size = min_size
        self.num_classes = num_classes
        self.bbox_aug_enabled = bbox_aug_enabled
        self.tile_hw = tile_hw

    def forward_for_single_feature_map(self, locations, box_cls,
                                       box_regression, centerness,
                                       image_sizes):
        return fcos_level_pallas(
            locations, box_cls, box_regression, centerness, image_sizes,
            pre_nms_thresh=self.pre_nms_thresh,
            pre_nms_top_n=self.pre_nms_top_n,
            min_size=self.min_size,
            tile_hw=self.tile_hw)

    def forward(self, locations, box_cls, box_regression, centerness,
                image_sizes):
        # TODO(synk): if the producer can emit a single concatenated
        # (N, C, sum(HW)) buffer, the five levels could share one pallas_call
        # (per-level image bounds via scalar prefetch) to amortize launch cost.
        per_level = []
        for l, o, b, c in zip(locations, box_cls, box_regression, centerness):
            per_level.append(
                self.forward_for_single_feature_map(l, o, b, c, image_sizes))
        # "Instances.cat" across levels == concatenate along the location axis.
        merged = {
            "scores": jnp.concatenate([p["scores"] for p in per_level], axis=2),
            "boxes": jnp.concatenate([p["boxes"] for p in per_level], axis=2),
            "candidate_mask": jnp.concatenate(
                [p["candidate_mask"] for p in per_level], axis=2),
            "keep_mask": jnp.concatenate(
                [p["keep_mask"] for p in per_level], axis=1),
            "pre_nms_top_n": jnp.stack(
                [p["pre_nms_top_n"] for p in per_level], axis=1),
            "num_locations": jnp.asarray(
                [p["num_locations"] for p in per_level], jnp.int32),
        }
        # TODO(synk): per-image nonzero gather / topk with data-dependent k has
        # no fixed-shape Pallas equivalent; dense masks + clamped counts are
        # returned instead.
        # TODO(synk): select_over_all_levels (batched_nms + kthvalue) is a
        # sequential, data-dependent algorithm with no clean Pallas equivalent.
        return merged


def _ref_level(locations, box_cls, box_regression, centerness, image_sizes,
               pre_nms_thresh, pre_nms_top_n, min_size):
    """Pure-JAX reference mirroring the PyTorch dense math (channel-major)."""
    N, C, H, W = box_cls.shape
    HW = H * W
    cls = jax.nn.sigmoid(box_cls.reshape(N, C, HW).astype(jnp.float32))
    reg = box_regression.reshape(N, 4, HW).astype(jnp.float32)
    ctr = jax.nn.sigmoid(centerness.reshape(N, 1, HW).astype(jnp.float32))
    cand = cls > pre_nms_thresh
    topn = jnp.minimum(cand.reshape(N, -1).sum(1), pre_nms_top_n).astype(jnp.int32)
    scores = jnp.sqrt(cls * ctr)
    x = locations[:, 0][None]
    y = locations[:, 1][None]
    x1 = x - reg[:, 0]
    y1 = y - reg[:, 1]
    x2 = x + reg[:, 2]
    y2 = y + reg[:, 3]
    h = image_sizes[:, 0:1].astype(jnp.float32)
    w = image_sizes[:, 1:2].astype(jnp.float32)
    x1 = jnp.clip(x1, 0.0, w - 1.0)
    y1 = jnp.clip(y1, 0.0, h - 1.0)
    x2 = jnp.clip(x2, 0.0, w - 1.0)
    y2 = jnp.clip(y2, 0.0, h - 1.0)
    boxes = jnp.stack([x1, y1, x2, y2], axis=1)
    keep = (y2 > y1) & (x2 > x1) & ((x2 - x1) >= min_size) & ((y2 - y1) >= min_size)
    return scores, boxes, cand, topn, keep


if __name__ == "__main__":
    key = jax.random.PRNGKey(0)
    N, C = 2, 4
    # (H, W, stride): HW = 192 (ragged last tile), 256 (full tiles), 64 (< 128)
    level_shapes = [(16, 12, 8), (16, 16, 16), (8, 8, 32)]
    keys = jax.random.split(key, 3 * len(level_shapes))

    locations, box_cls, box_reg, ctrness = [], [], [], []
    for li, (H, W, stride) in enumerate(level_shapes):
        k1, k2, k3 = keys[3 * li:3 * li + 3]
        xs = (jnp.arange(W, dtype=jnp.float32) + 0.5) * stride
        ys = (jnp.arange(H, dtype=jnp.float32) + 0.5) * stride
        yy, xx = jnp.meshgrid(ys, xs, indexing="ij")
        locations.append(jnp.stack([xx.reshape(-1), yy.reshape(-1)], axis=1))
        box_cls.append(jax.random.normal(k1, (N, C, H, W), jnp.float32))
        box_reg.append(jax.random.uniform(k2, (N, 4, H, W), jnp.float32,
                                          minval=0.0, maxval=32.0))
        ctrness.append(jax.random.normal(k3, (N, 1, H, W), jnp.float32))
    image_sizes = jnp.array([[128, 128], [120, 100]], dtype=jnp.int32)

    # Small lane tile so the multi-tile and ragged-tail paths are both
    # exercised at toy sizes; real deployments keep the 2048 default.
    post = FCOSPostProcessorPallas(
        pre_nms_thresh=0.3, pre_nms_top_n=500, nms_thresh=0.6,
        fpn_post_nms_top_n=20, min_size=0, num_classes=C, tile_hw=128)

    out = post.forward(locations, box_cls, box_reg, ctrness, image_sizes)
    jax.block_until_ready(out)

    # Verify the Pallas kernel against the pure-JAX reference, per level.
    for li, (H, W, _) in enumerate(level_shapes):
        got = post.forward_for_single_feature_map(
            locations[li], box_cls[li], box_reg[li], ctrness[li], image_sizes)
        jax.block_until_ready(got)
        ref_s, ref_b, ref_c, ref_t, ref_k = _ref_level(
            locations[li], box_cls[li], box_reg[li], ctrness[li], image_sizes,
            post.pre_nms_thresh, post.pre_nms_top_n, post.min_size)
        assert jnp.allclose(got["scores"], ref_s, atol=2e-5, rtol=2e-5)
        assert jnp.allclose(got["boxes"], ref_b, atol=1e-4, rtol=1e-5)
        assert bool(jnp.all((got["candidate_mask"] != 0) == ref_c))
        assert bool(jnp.all(got["pre_nms_top_n"] == ref_t))
        assert bool(jnp.all((got["keep_mask"] != 0) == ref_k))

    # Merged outputs span exactly sum(HW) locations.
    total_hw = sum(h * w for h, w, _ in level_shapes)
    assert out["scores"].shape == (N, C, total_hw)
    assert out["keep_mask"].shape == (N, total_hw)

    print("KERNEL_OK")
</pallas_src>

<mosaic_0001>
module attributes {stable_mosaic.version = 11 : i64} {
  func.func @_fcos_level_kernel(%arg0: i32, %arg1: i32, %arg2: memref<2x2xi32, #tpu.memory_space<smem>>, %arg3: memref<1x4x128xf32, #tpu.memory_space<vmem>>, %arg4: memref<1x4x128xf32, #tpu.memory_space<vmem>>, %arg5: memref<1x1x128xf32, #tpu.memory_space<vmem>>, %arg6: memref<4x128xf32, #tpu.memory_space<vmem>>, %arg7: memref<1x4x128xf32, #tpu.memory_space<vmem>>, %arg8: memref<1x4x128xf32, #tpu.memory_space<vmem>>, %arg9: memref<1x4x128xi8, #tpu.memory_space<vmem>>, %arg10: memref<1x1x128xi8, #tpu.memory_space<vmem>>, %arg11: memref<1x1x1xi32, #tpu.memory_space<vmem>>) attributes {dimension_semantics = [#tpu.dimension_semantics<parallel>, #tpu.dimension_semantics<parallel>], iteration_bounds = array<i64: 2, 2>, scalar_prefetch = 1 : i64, scratch_operands = 0 : i64, tpu.core_type = #tpu.core_type<tc>, window_params = [{transform_indices = @transform_0, window_bounds = array<i64: 1, 4, 128>}, {transform_indices = @transform_1, window_bounds = array<i64: 1, 4, 128>}, {transform_indices = @transform_2, window_bounds = array<i64: 1, 1, 128>}, {transform_indices = @transform_3, window_bounds = array<i64: 4, 128>}, {transform_indices = @transform_4, window_bounds = array<i64: 1, 4, 128>}, {transform_indices = @transform_5, window_bounds = array<i64: 1, 4, 128>}, {transform_indices = @transform_6, window_bounds = array<i64: 1, 4, 128>}, {transform_indices = @transform_7, window_bounds = array<i64: 1, 1, 128>}, {transform_indices = @transform_8, window_bounds = array<i64: 1, 1, 1>}]} {
    %0 = tpu.iota {dimensions = array<i32: 1>} : vector<1x128xi32>
    %c128_i32 = arith.constant 128 : i32
    %1 = arith.muli %arg1, %c128_i32 : i32
    %2 = vector.broadcast %1 : i32 to vector<1x128xi32>
    %3 = arith.addi %2, %0 : vector<1x128xi32>
    %c192_i32 = arith.constant 192 : i32
    %4 = vector.broadcast %c192_i32 : i32 to vector<1x128xi32>
    %5 = arith.cmpi slt, %3, %4 : vector<1x128xi32>
    %c0 = arith.constant 0 : index
    %c0_0 = arith.constant 0 : index
    %c0_1 = arith.constant 0 : index
    %6 = vector.load %arg3[%c0, %c0_0, %c0_1] : memref<1x4x128xf32, #tpu.memory_space<vmem>>, vector<1x4x128xf32>
    %7 = vector.shape_cast %6 : vector<1x4x128xf32> to vector<4x128xf32>
    %c0_2 = arith.constant 0 : index
    %c0_3 = arith.constant 0 : index
    %c0_4 = arith.constant 0 : index
    %8 = vector.load %arg5[%c0_2, %c0_3, %c0_4] : memref<1x1x128xf32, #tpu.memory_space<vmem>>, vector<1x1x128xf32>
    %9 = vector.shape_cast %8 : vector<1x1x128xf32> to vector<1x128xf32>
    %cst = arith.constant -0.847297847 : f32
    %10 = vector.broadcast %cst : f32 to vector<4x128xf32>
    %11 = arith.cmpf ogt, %7, %10 : vector<4x128xf32>
    %12 = vector.broadcast %5 : vector<1x128xi1> to vector<4x128xi1>
    %13 = arith.andi %11, %12 : vector<4x128xi1>
    %14 = arith.extui %13 : vector<4x128xi1> to vector<4x128xi8>
    %15 = vector.shape_cast %14 : vector<4x128xi8> to vector<1x4x128xi8>
    %c0_5 = arith.constant 0 : index
    %c0_6 = arith.constant 0 : index
    %c0_7 = arith.constant 0 : index
    %16 = vector.load %arg9[%c0_5, %c0_6, %c0_7] : memref<1x4x128xi8, #tpu.memory_space<vmem>>, vector<1x4x128xi8>
    tpu.vector_store %arg9[%c0_5, %c0_6, %c0_7], %15 {strides = array<i32>} : memref<1x4x128xi8, #tpu.memory_space<vmem>>, vector<1x4x128xi8>,
    %cst_8 = arith.constant 0.000000e+00 : f32
    %17 = vector.broadcast %cst_8 : f32 to vector<4x128xf32>
    %18 = arith.subf %17, %7 : vector<4x128xf32>
    %19 = math.exp %18 : vector<4x128xf32>
    %cst_9 = arith.constant 1.000000e+00 : f32
    %20 = vector.broadcast %cst_9 : f32 to vector<4x128xf32>
    %21 = arith.addf %20, %19 : vector<4x128xf32>
    %cst_10 = arith.constant 0.000000e+00 : f32
    %22 = vector.broadcast %cst_10 : f32 to vector<1x128xf32>
    %23 = arith.subf %22, %9 : vector<1x128xf32>
    %24 = math.exp %23 : vector<1x128xf32>
    %cst_11 = arith.constant 1.000000e+00 : f32
    %25 = vector.broadcast %cst_11 : f32 to vector<1x128xf32>
    %26 = arith.addf %25, %24 : vector<1x128xf32>
    %27 = vector.broadcast %26 : vector<1x128xf32> to vector<4x128xf32>
    %28 = arith.mulf %21, %27 : vector<4x128xf32>
    %29 = math.rsqrt %28 : vector<4x128xf32>
    %cst_12 = arith.constant 0.000000e+00 : f32
    %30 = vector.shape_cast %5 : vector<1x128xi1> to vector<1x128xi1>
    %31 = vector.broadcast %30 : vector<1x128xi1> to vector<4x128xi1>
    %32 = vector.broadcast %cst_12 : f32 to vector<4x128xf32>
    %33 = arith.select %31, %29, %32 : vector<4x128xi1>, vector<4x128xf32>
    %34 = vector.shape_cast %33 : vector<4x128xf32> to vector<1x4x128xf32>
    %c0_13 = arith.constant 0 : index
    %c0_14 = arith.constant 0 : index
    %c0_15 = arith.constant 0 : index
    %35 = vector.load %arg7[%c0_13, %c0_14, %c0_15] : memref<1x4x128xf32, #tpu.memory_space<vmem>>, vector<1x4x128xf32>
    tpu.vector_store %arg7[%c0_13, %c0_14, %c0_15], %34 {strides = array<i32>} : memref<1x4x128xf32, #tpu.memory_space<vmem>>, vector<1x4x128xf32>,
    %36 = arith.extui %13 : vector<4x128xi1> to vector<4x128xi32>
    %37 = vector.shape_cast %36 : vector<4x128xi32> to vector<1x4x128xi32>
    %cst_16 = arith.constant dense<0> : vector<1xi32>
    %38 = vector.multi_reduction <add>, %37, %cst_16 [1, 2] : vector<1x4x128xi32> to vector<1xi32>
    %39 = vector.shape_cast %38 : vector<1xi32> to vector<1x1x1xi32>
    %40 = vector.extract %39[0, 0, 0] : i32 from vector<1x1x1xi32>
    %41 = vector.broadcast %40 : i32 to vector<1x1x1xi32>
    %c0_17 = arith.constant 0 : index
    %c0_18 = arith.constant 0 : index
    %c0_19 = arith.constant 0 : index
    %42 = vector.load %arg11[%c0_17, %c0_18, %c0_19] : memref<1x1x1xi32, #tpu.memory_space<vmem>>, vector<1x1x1xi32>
    tpu.vector_store %arg11[%c0_17, %c0_18, %c0_19], %41 {strides = array<i32>} : memref<1x1x1xi32, #tpu.memory_space<vmem>>, vector<1x1x1xi32>,
    %c0_20 = arith.constant 0 : index
    %c0_21 = arith.constant 0 : index
    %c0_22 = arith.constant 0 : index
    %43 = vector.load %arg4[%c0_20, %c0_21, %c0_22] : memref<1x4x128xf32, #tpu.memory_space<vmem>>, vector<1x4x128xf32>
    %44 = vector.shape_cast %43 : vector<1x4x128xf32> to vector<4x128xf32>
    %c0_23 = arith.constant 0 : index
    %c0_24 = arith.constant 0 : index
    %45 = vector.load %arg6[%c0_23, %c0_24] : memref<4x128xf32, #tpu.memory_space<vmem>>, vector<4x128xf32>
    %46 = tpu.iota {dimensions = array<i32: 0>} : vector<4x1xi32>
    %c2_i32 = arith.constant 2 : i32
    %47 = vector.broadcast %c2_i32 : i32 to vector<4x1xi32>
    %48 = arith.cmpi slt, %46, %47 : vector<4x1xi32>
    %cst_25 = arith.constant -1.000000e+00 : f32
    %cst_26 = arith.constant 1.000000e+00 : f32
    %49 = vector.broadcast %cst_25 : f32 to vector<4x1xf32>
    %50 = vector.broadcast %cst_26 : f32 to vector<4x1xf32>
    %51 = arith.select %48, %49, %50 : vector<4x1xi1>, vector<4x1xf32>
    %52 = arith.index_cast %arg0 : i32 to index
    %c0_27 = arith.constant 0 : index
    %53 = memref.load %arg2[%52, %c0_27] : memref<2x2xi32, #tpu.memory_space<smem>>
    %54 = arith.sitofp %53 : i32 to f32
    %55 = arith.index_cast %arg0 : i32 to index
    %c1 = arith.constant 1 : index
    %56 = memref.load %arg2[%55, %c1] : memref<2x2xi32, #tpu.memory_space<smem>>
    %57 = arith.sitofp %56 : i32 to f32
    %c2_i32_28 = arith.constant 2 : i32
    %c0_i32 = arith.constant 0 : i32
    %58 = arith.cmpi eq, %c2_i32_28, %c0_i32 : i32
    %c1_i32 = arith.constant 1 : i32
    %59 = arith.select %58, %c1_i32, %c2_i32_28 : i32
    %60 = vector.broadcast %59 : i32 to vector<4x1xi32>
    %61 = arith.remsi %46, %60 : vector<4x1xi32>
    %c0_i32_29 = arith.constant 0 : i32
    %62 = vector.broadcast %c0_i32_29 : i32 to vector<4x1xi32>
    %63 = arith.cmpi ne, %61, %62 : vector<4x1xi32>
    %c0_i32_30 = arith.constant 0 : i32
    %64 = vector.broadcast %c0_i32_30 : i32 to vector<4x1xi32>
    %65 = arith.cmpi slt, %61, %64 : vector<4x1xi32>
    %c0_i32_31 = arith.constant 0 : i32
    %66 = arith.cmpi slt, %59, %c0_i32_31 : i32
    %67 = vector.broadcast %66 : i1 to vector<4x1xi1>
    %68 = vector.broadcast %67 : vector<4x1xi1> to vector<4x1xi1>
    %69 = arith.xori %65, %68 : vector<4x1xi1>
    %70 = arith.andi %69, %63 : vector<4x1xi1>
    %71 = vector.broadcast %59 : i32 to vector<4x1xi32>
    %72 = arith.addi %61, %71 : vector<4x1xi32>
    %73 = arith.select %70, %72, %61 : vector<4x1xi1>, vector<4x1xi32>
    %c0_i32_32 = arith.constant 0 : i32
    %74 = vector.broadcast %c0_i32_32 : i32 to vector<4x1xi32>
    %75 = arith.cmpi eq, %73, %74 : vector<4x1xi32>
    %cst_33 = arith.constant 1.000000e+00 : f32
    %76 = arith.subf %57, %cst_33 : f32
    %cst_34 = arith.constant 1.000000e+00 : f32
    %77 = arith.subf %54, %cst_34 : f32
    %78 = vector.broadcast %76 : f32 to vector<4x1xf32>
    %79 = vector.broadcast %77 : f32 to vector<4x1xf32>
    %80 = arith.select %75, %78, %79 : vector<4x1xi1>, vector<4x1xf32>
    %81 = vector.broadcast %51 : vector<4x1xf32> to vector<4x128xf32>
    %82 = arith.mulf %81, %44 : vector<4x128xf32>
    %83 = arith.addf %45, %82 : vector<4x128xf32>
    %cst_35 = arith.constant 0.000000e+00 : f32
    %84 = vector.broadcast %cst_35 : f32 to vector<4x128xf32>
    %85 = arith.maximumf %84, %83 : vector<4x128xf32>
    %86 = vector.broadcast %80 : vector<4x1xf32> to vector<4x128xf32>
    %87 = arith.minimumf %86, %85 : vector<4x128xf32>
    %cst_36 = arith.constant 0.000000e+00 : f32
    %88 = vector.shape_cast %5 : vector<1x128xi1> to vector<1x128xi1>
    %89 = vector.broadcast %88 : vector<1x128xi1> to vector<4x128xi1>
    %90 = vector.broadcast %cst_36 : f32 to vector<4x128xf32>
    %91 = arith.select %89, %87, %90 : vector<4x128xi1>, vector<4x128xf32>
    %92 = vector.shape_cast %91 : vector<4x128xf32> to vector<1x4x128xf32>
    %c0_37 = arith.constant 0 : index
    %c0_38 = arith.constant 0 : index
    %c0_39 = arith.constant 0 : index
    %93 = vector.load %arg8[%c0_37, %c0_38, %c0_39] : memref<1x4x128xf32, #tpu.memory_space<vmem>>, vector<1x4x128xf32>
    tpu.vector_store %arg8[%c0_37, %c0_38, %c0_39], %92 {strides = array<i32>} : memref<1x4x128xf32, #tpu.memory_space<vmem>>, vector<1x4x128xf32>,
    %94 = vector.extract_strided_slice %91 {offsets = [0, 0], sizes = [1, 128], strides = [1, 1]} : vector<4x128xf32> to vector<1x128xf32>
    %95 = vector.extract_strided_slice %91 {offsets = [1, 0], sizes = [1, 128], strides = [1, 1]} : vector<4x128xf32> to vector<1x128xf32>
    %96 = vector.extract_strided_slice %91 {offsets = [2, 0], sizes = [1, 128], strides = [1, 1]} : vector<4x128xf32> to vector<1x128xf32>
    %97 = vector.extract_strided_slice %91 {offsets = [3, 0], sizes = [1, 128], strides = [1, 1]} : vector<4x128xf32> to vector<1x128xf32>
    %98 = arith.cmpf ogt, %97, %95 : vector<1x128xf32>
    %99 = arith.cmpf ogt, %96, %94 : vector<1x128xf32>
    %100 = arith.andi %98, %99 : vector<1x128xi1>
    %101 = arith.subf %96, %94 : vector<1x128xf32>
    %cst_40 = arith.constant 0.000000e+00 : f32
    %102 = vector.broadcast %cst_40 : f32 to vector<1x128xf32>
    %103 = arith.cmpf oge, %101, %102 : vector<1x128xf32>
    %104 = arith.andi %100, %103 : vector<1x128xi1>
    %105 = arith.subf %97, %95 : vector<1x128xf32>
    %cst_41 = arith.constant 0.000000e+00 : f32
    %106 = vector.broadcast %cst_41 : f32 to vector<1x128xf32>
    %107 = arith.cmpf oge, %105, %106 : vector<1x128xf32>
    %108 = arith.andi %104, %107 : vector<1x128xi1>
    %109 = arith.andi %108, %5 : vector<1x128xi1>
    %110 = arith.extui %109 : vector<1x128xi1> to vector<1x128xi8>
    %111 = vector.shape_cast %110 : vector<1x128xi8> to vector<1x1x128xi8>
    %c0_42 = arith.constant 0 : index
    %c0_43 = arith.constant 0 : index
    %c0_44 = arith.constant 0 : index
    %112 = vector.load %arg10[%c0_42, %c0_43, %c0_44] : memref<1x1x128xi8, #tpu.memory_space<vmem>>, vector<1x1x128xi8>
    tpu.vector_store %arg10[%c0_42, %c0_43, %c0_44], %111 {strides = array<i32>} : memref<1x1x128xi8, #tpu.memory_space<vmem>>, vector<1x1x128xi8>,
    return
  }
  func.func @transform_0(%arg0: i32, %arg1: i32, %arg2: memref<2x2xi32, #tpu.memory_space<smem>>) -> (i32, i32, i32) {
    %c0_i32 = arith.constant 0 : i32
    %c0_i32_0 = arith.constant 0 : i32
    return %arg0, %c0_i32, %arg1 : i32, i32, i32
  }
  func.func @transform_1(%arg0: i32, %arg1: i32, %arg2: memref<2x2xi32, #tpu.memory_space<smem>>) -> (i32, i32, i32) {
    %c0_i32 = arith.constant 0 : i32
    %c0_i32_0 = arith.constant 0 : i32
    return %arg0, %c0_i32, %arg1 : i32, i32, i32
  }
  func.func @transform_2(%arg0: i32, %arg1: i32, %arg2: memref<2x2xi32, #tpu.memory_space<smem>>) -> (i32, i32, i32) {
    %c0_i32 = arith.constant 0 : i32
    %c0_i32_0 = arith.constant 0 : i32
    return %arg0, %c0_i32, %arg1 : i32, i32, i32
  }
  func.func @transform_3(%arg0: i32, %arg1: i32, %arg2: memref<2x2xi32, #tpu.memory_space<smem>>) -> (i32, i32) {
    %c0_i32 = arith.constant 0 : i32
    %c0_i32_0 = arith.constant 0 : i32
    return %c0_i32, %arg1 : i32, i32
  }
  func.func @transform_4(%arg0: i32, %arg1: i32, %arg2: memref<2x2xi32, #tpu.memory_space<smem>>) -> (i32, i32, i32) {
    %c0_i32 = arith.constant 0 : i32
    %c0_i32_0 = arith.constant 0 : i32
    return %arg0, %c0_i32, %arg1 : i32, i32, i32
  }
  func.func @transform_5(%arg0: i32, %arg1: i32, %arg2: memref<2x2xi32, #tpu.memory_space<smem>>) -> (i32, i32, i32) {
    %c0_i32 = arith.constant 0 : i32
    %c0_i32_0 = arith.constant 0 : i32
    return %arg0, %c0_i32, %arg1 : i32, i32, i32
  }
  func.func @transform_6(%arg0: i32, %arg1: i32, %arg2: memref<2x2xi32, #tpu.memory_space<smem>>) -> (i32, i32, i32) {
    %c0_i32 = arith.constant 0 : i32
    %c0_i32_0 = arith.constant 0 : i32
    return %arg0, %c0_i32, %arg1 : i32, i32, i32
  }
  func.func @transform_7(%arg0: i32, %arg1: i32, %arg2: memref<2x2xi32, #tpu.memory_space<smem>>) -> (i32, i32, i32) {
    %c0_i32 = arith.constant 0 : i32
    %c0_i32_0 = arith.constant 0 : i32
    return %arg0, %c0_i32, %arg1 : i32, i32, i32
  }
  func.func @transform_8(%arg0: i32, %arg1: i32, %arg2: memref<2x2xi32, #tpu.memory_space<smem>>) -> (i32, i32, i32) {
    %c2_i32 = arith.constant 2 : i32
    %0 = arith.muli %arg0, %c2_i32 : i32
    %1 = arith.addi %0, %arg1 : i32
    %c0_i32 = arith.constant 0 : i32
    %c0_i32_0 = arith.constant 0 : i32
    %c0_i32_1 = arith.constant 0 : i32
    return %1, %c0_i32, %c0_i32_0 : i32, i32, i32
  }
}

</mosaic_0001>

<llo_original>
// kernel: tpu_custom_call.1
$region0: #{tpu_custom_call.1}
  #allocation0 [shape = 'u32[]', space=smem, size = 0x4, offset = 0x4, fixed_abs, tag = 'smem constant byte address 0x4 - core index']
  #allocation1 [shape = 'u32[72,128]{1,0:T(1,128)}', space=vmem, size = 0x9000, scoped, tag = 'internal scratch']
  #allocation2 [shape = 's32[1]{0}', space=sflag, size = 0x4, scoped, tag = 'scoped memory for tpu_custom_call.1']
  #allocation3 [shape = 'u8[1024]{0}', space=smem, size = 0x400, scoped, tag = 'prefetched SMEM operand 0']
  %s0 = inlined_call_operand.hbm [shape: s32[2,2], index: 0, kind: input, shape index: {}]
  %s1 = inlined_call_operand.hbm [shape: f32[2,4,192], index: 1, kind: input, shape index: {}]
  %s2 = inlined_call_operand.hbm [shape: f32[2,4,192], index: 2, kind: input, shape index: {}]
  %s3 = inlined_call_operand.hbm [shape: f32[2,1,192], index: 3, kind: input, shape index: {}]
  %s4 = inlined_call_operand.hbm [shape: f32[4,192], index: 4, kind: input, shape index: {}]
  %s5 = inlined_call_operand.hbm [shape: f32[2,4,192], index: 5, kind: output, shape index: {0}]
  %s6 = inlined_call_operand.hbm [shape: f32[2,4,192], index: 6, kind: output, shape index: {1}]
  %s7 = inlined_call_operand.hbm [shape: s8[2,4,192], index: 7, kind: output, shape index: {2}]
  %s8 = inlined_call_operand.vmem [shape: s8[2,1,192], index: 8, kind: output, shape index: {3}]
  %s9 = inlined_call_operand.vmem [shape: s32[4,1,1], index: 9, kind: output, shape index: {4}]
  %10 = xla_tuple %s5, %s6, %s7, %s8, %s9
  %s11 = sld [smem:[#allocation0]]
  $region97: #{tpu_custom_call.1} parent=0
    _
  %s13 = ssub.s32 1, %s11
  %s14 = scalar_select 0, %s13, %s11
  %s16 = sshll.u32 %s0, 4
  %s17 = int_to_ptr.hbm [resolvable:$true] %s16
  %19 = dma.hbm_to_smem %s17, 32, [#allocation3], [#allocation2]
  %21 = dma.done [#allocation2], 32
  %22 = sfence
  $region1: #{tpu_custom_call.1} parent=0
    #allocation4 [shape = 'u8[4096]{0}', space=vmem, size = 0x1000, scoped, tag = 'input window, operand 1']
    #allocation5 [shape = 's32[2]{0}', space=sflag, size = 0x8, scoped, tag = 'scoped memory for tpu_custom_call.1']
    #allocation6 [shape = 's32[2]{0}', space=sflag, size = 0x8, scoped, tag = 'scoped memory for tpu_custom_call.1']
    #allocation7 [shape = 'u8[4096]{0}', space=vmem, size = 0x1000, scoped, tag = 'input window, operand 2']
    #allocation8 [shape = 's32[2]{0}', space=sflag, size = 0x8, scoped, tag = 'scoped memory for tpu_custom_call.1']
    #allocation9 [shape = 'u8[1024]{0}', space=vmem, size = 0x400, scoped, tag = 'input window, operand 3']
    #allocation10 [shape = 'u8[4096]{0}', space=vmem, size = 0x1000, scoped, tag = 'input window, operand 4']
    #allocation11 [shape = 's32[2]{0}', space=sflag, size = 0x8, scoped, tag = 'scoped memory for tpu_custom_call.1']
    #allocation12 [shape = 'u8[4096]{0}', space=vmem, size = 0x1000, scoped, tag = 'output window, operand 0']
    #allocation13 [shape = 'u8[4096]{0}', space=vmem, size = 0x1000, scoped, tag = 'output window, operand 1']
    #allocation14 [shape = 's32[2]{0}', space=sflag, size = 0x8, scoped, tag = 'scoped memory for tpu_custom_call.1']
    #allocation15 [shape = 'u8[1024]{0}', space=vmem, size = 0x400, scoped, tag = 'output window, operand 2']
    %23 = vsyncpa [#allocation5], 0
    %s24 = scalar_lea.sflag [#allocation5], 1
    %25 = vsyncpa %s24, 0
    %26 = vsyncpa [#allocation8], 0
    %s27 = scalar_lea.sflag [#allocation8], 1
    %28 = vsyncpa %s27, 0
    %29 = vsyncpa [#allocation11], 0
    %s30 = scalar_lea.sflag [#allocation11], 1
    %31 = vsyncpa %s30, 0
    %32 = vsyncpa [#allocation6], 0
    %s33 = scalar_lea.sflag [#allocation6], 1
    %34 = vsyncpa %s33, 0
    %35 = vsyncpa [#allocation14], 0
    %s36 = scalar_lea.sflag [#allocation14], 1
    %37 = vsyncpa %s36, 0
    loop: start=0, step=1, limit=6
    $region2: #{tpu_custom_call.1} parent=1 // loop_pre_header
      _
    $region3: #{tpu_custom_call.1} parent=1 // loop_header
      %s39 = sphi 0, %s43
      %p40 = scmp.ge.s32.totalorder %s39, 6
      %s46 = sphi 0, %s58
      %s47 = sphi 0, %s54
      %s48 = sphi 0, %s46
      %s49 = sphi 0, %s47
      %s50 = sphi 0, %s48
      %s51 = sphi 0, %s49
      %s63 = sphi 0, %s65
      %s66 = sphi 0, %s63
      %s67 = sphi 0, %s66
      %s83 = sphi 0, %s67
      %s91 = sphi 0, %s93
      %s94 = sphi 0, %s91
      %s95 = sphi 0, %s94
      %s111 = sphi 0, %s95
      %s119 = sphi 0, %s121
      %s122 = sphi 0, %s119
      %s123 = sphi 0, %s122
      %s139 = sphi 0, %s123
      %s145 = sphi 0, %s147
      %s148 = sphi 0, %s145
      %s149 = sphi 0, %s148
      %s165 = sphi 0, %s149
      %s173 = sphi 0, %s175
      %s176 = sphi 0, %s173
      %s177 = sphi 0, %s176
      %s193 = sphi 0, %s177
      %s201 = sphi 0, %s203
      %s204 = sphi 0, %s201
      %s205 = sphi 0, %s204
      %s221 = sphi 0, %s205
      %s229 = sphi 0, %s231
      %s232 = sphi 0, %s229
      %s233 = sphi 0, %s232
      %s249 = sphi 0, %s233
      %s257 = sphi 0, %s259
      %s260 = sphi 0, %s257
      %s261 = sphi 0, %s260
      %s277 = sphi 0, %s261
      %s287 = sphi 0, %s289
      %s290 = sphi 0, %s287
      %s291 = sphi 0, %s290
      %s307 = sphi 0, %s291
    $region4: #{tpu_custom_call.1} parent=1 // loop_header_branch
      %42 = sbr.rel (%p40) target = $region8
    $region5: #{tpu_custom_call.1} parent=1 // loop_body
      %s44 = ssub.s32 %s39, 1
      %s45 = ssub.s32 %s39, 2
      %s52 = sadd.s32 1, %s47
      %p53 = scmp.ge.s32.totalorder %s52, 2
      %s54 = scalar_select %p53, 0, %s52
      %s55 = sadd.s32 1, %s46
      %s56 = scalar_select %p53, %s55, %s46
      %p57 = scmp.ge.s32.totalorder %s56, 2
      %s58 = scalar_select %p57, 0, %s56
      %s59 = ssub.s32 %s46, %s58
      %s60 = ssub.s32 %s47, %s54
      %s61 = sor.u32 %s59, %s60
      %p62 = scmp.eq.s32.totalorder %s61, 0
      %s64 = sadd.s32 %s63, 1
      %s65 = scalar_select %p62, %s63, %s64
      %p68 = pneg %p62
      %p69 = scmp.eq.s32.totalorder %s39, 3
      %p70 = por %p68, %p69
      %p71 = scmp.ne.s32.totalorder %s63, %s66
      %p72 = scmp.eq.s32.totalorder %s39, 0
      %p73 = por %p71, %p72
      %p74 = scmp.ne.s32.totalorder %s63, %s66
      %p75 = scmp.eq.s32.totalorder %s44, 3
      %p76 = por %p74, %p75
      %p77 = scmp.ne.s32.totalorder %s66, %s67
      %p78 = scmp.eq.s32.totalorder %s44, 0
      %p79 = por %p77, %p78
      %p80 = scmp.ne.s32.totalorder %s66, %s67
      %p81 = scmp.eq.s32.totalorder %s45, 3
      %p82 = por %p80, %p81
      %p84 = scmp.ne.s32.totalorder %s67, %s83
      %p85 = scmp.eq.s32.totalorder %s45, 0
      %p86 = por %p84, %p85
      %s87 = ssub.s32 %s46, %s58
      %s88 = ssub.s32 %s47, %s54
      %s89 = sor.u32 %s87, %s88
      %p90 = scmp.eq.s32.totalorder %s89, 0
      %s92 = sadd.s32 %s91, 1
      %s93 = scalar_select %p90, %s91, %s92
      %p96 = pneg %p90
      %p97 = scmp.eq.s32.totalorder %s39, 3
      %p98 = por %p96, %p97
      %p99 = scmp.ne.s32.totalorder %s91, %s94
      %p100 = scmp.eq.s32.totalorder %s39, 0
      %p101 = por %p99, %p100
      %p102 = scmp.ne.s32.totalorder %s91, %s94
      %p103 = scmp.eq.s32.totalorder %s44, 3
      %p104 = por %p102, %p103
      %p105 = scmp.ne.s32.totalorder %s94, %s95
      %p106 = scmp.eq.s32.totalorder %s44, 0
      %p107 = por %p105, %p106
      %p108 = scmp.ne.s32.totalorder %s94, %s95
      %p109 = scmp.eq.s32.totalorder %s45, 3
      %p110 = por %p108, %p109
      %p112 = scmp.ne.s32.totalorder %s95, %s111
      %p113 = scmp.eq.s32.totalorder %s45, 0
      %p114 = por %p112, %p113
      %s115 = ssub.s32 %s46, %s58
      %s116 = ssub.s32 %s47, %s54
      %s117 = sor.u32 %s115, %s116
      %p118 = scmp.eq.s32.totalorder %s117, 0
      %s120 = sadd.s32 %s119, 1
      %s121 = scalar_select %p118, %s119, %s120
      %p124 = pneg %p118
      %p125 = scmp.eq.s32.totalorder %s39, 3
      %p126 = por %p124, %p125
      %p127 = scmp.ne.s32.totalorder %s119, %s122
      %p128 = scmp.eq.s32.totalorder %s39, 0
      %p129 = por %p127, %p128
      %p130 = scmp.ne.s32.totalorder %s119, %s122
      %p131 = scmp.eq.s32.totalorder %s44, 3
      %p132 = por %p130, %p131
      %p133 = scmp.ne.s32.totalorder %s122, %s123
      %p134 = scmp.eq.s32.totalorder %s44, 0
      %p135 = por %p133, %p134
      %p136 = scmp.ne.s32.totalorder %s122, %s123
      %p137 = scmp.eq.s32.totalorder %s45, 3
      %p138 = por %p136, %p137
      %p140 = scmp.ne.s32.totalorder %s123, %s139
      %p141 = scmp.eq.s32.totalorder %s45, 0
      %p142 = por %p140, %p141
      %s143 = ssub.s32 %s47, %s54
      %p144 = scmp.eq.s32.totalorder %s143, 0
      %s146 = sadd.s32 %s145, 1
      %s147 = scalar_select %p144, %s145, %s146
      %p150 = pneg %p144
      %p151 = scmp.eq.s32.totalorder %s39, 3
      %p152 = por %p150, %p151
      %p153 = scmp.ne.s32.totalorder %s145, %s148
      %p154 = scmp.eq.s32.totalorder %s39, 0
      %p155 = por %p153, %p154
      %p156 = scmp.ne.s32.totalorder %s145, %s148
      %p157 = scmp.eq.s32.totalorder %s44, 3
      %p158 = por %p156, %p157
      %p159 = scmp.ne.s32.totalorder %s148, %s149
      %p160 = scmp.eq.s32.totalorder %s44, 0
      %p161 = por %p159, %p160
      %p162 = scmp.ne.s32.totalorder %s148, %s149
      %p163 = scmp.eq.s32.totalorder %s45, 3
      %p164 = por %p162, %p163
      %p166 = scmp.ne.s32.totalorder %s149, %s165
      %p167 = scmp.eq.s32.totalorder %s45, 0
      %p168 = por %p166, %p167
      %s169 = ssub.s32 %s46, %s58
      %s170 = ssub.s32 %s47, %s54
      %s171 = sor.u32 %s169, %s170
      %p172 = scmp.eq.s32.totalorder %s171, 0
      %s174 = sadd.s32 %s173, 1
      %s175 = scalar_select %p172, %s173, %s174
      %p178 = pneg %p172
      %p179 = scmp.eq.s32.totalorder %s39, 3
      %p180 = por %p178, %p179
      %p181 = scmp.ne.s32.totalorder %s173, %s176
      %p182 = scmp.eq.s32.totalorder %s39, 0
      %p183 = por %p181, %p182
      %p184 = scmp.ne.s32.totalorder %s173, %s176
      %p185 = scmp.eq.s32.totalorder %s44, 3
      %p186 = por %p184, %p185
      %p187 = scmp.ne.s32.totalorder %s176, %s177
      %p188 = scmp.eq.s32.totalorder %s44, 0
      %p189 = por %p187, %p188
      %p190 = scmp.ne.s32.totalorder %s176, %s177
      %p191 = scmp.eq.s32.totalorder %s45, 3
      %p192 = por %p190, %p191
      %p194 = scmp.ne.s32.totalorder %s177, %s193
      %p195 = scmp.eq.s32.totalorder %s45, 0
      %p196 = por %p194, %p195
      %s197 = ssub.s32 %s46, %s58
      %s198 = ssub.s32 %s47, %s54
      %s199 = sor.u32 %s197, %s198
      %p200 = scmp.eq.s32.totalorder %s199, 0
      %s202 = sadd.s32 %s201, 1
      %s203 = scalar_select %p200, %s201, %s202
      %p206 = pneg %p200
      %p207 = scmp.eq.s32.totalorder %s39, 3
      %p208 = por %p206, %p207
      %p209 = scmp.ne.s32.totalorder %s201, %s204
      %p210 = scmp.eq.s32.totalorder %s39, 0
      %p211 = por %p209, %p210
      %p212 = scmp.ne.s32.totalorder %s201, %s204
      %p213 = scmp.eq.s32.totalorder %s44, 3
      %p214 = por %p212, %p213
      %p215 = scmp.ne.s32.totalorder %s204, %s205
      %p216 = scmp.eq.s32.totalorder %s44, 0
      %p217 = por %p215, %p216
      %p218 = scmp.ne.s32.totalorder %s204, %s205
      %p219 = scmp.eq.s32.totalorder %s45, 3
      %p220 = por %p218, %p219
      %p222 = scmp.ne.s32.totalorder %s205, %s221
      %p223 = scmp.eq.s32.totalorder %s45, 0
      %p224 = por %p222, %p223
      %s225 = ssub.s32 %s46, %s58
      %s226 = ssub.s32 %s47, %s54
      %s227 = sor.u32 %s225, %s226
      %p228 = scmp.eq.s32.totalorder %s227, 0
      %s230 = sadd.s32 %s229, 1
      %s231 = scalar_select %p228, %s229, %s230
      %p234 = pneg %p228
      %p235 = scmp.eq.s32.totalorder %s39, 3
      %p236 = por %p234, %p235
      %p237 = scmp.ne.s32.totalorder %s229, %s232
      %p238 = scmp.eq.s32.totalorder %s39, 0
      %p239 = por %p237, %p238
      %p240 = scmp.ne.s32.totalorder %s229, %s232
      %p241 = scmp.eq.s32.totalorder %s44, 3
      %p242 = por %p240, %p241
      %p243 = scmp.ne.s32.totalorder %s232, %s233
      %p244 = scmp.eq.s32.totalorder %s44, 0
      %p245 = por %p243, %p244
      %p246 = scmp.ne.s32.totalorder %s232, %s233
      %p247 = scmp.eq.s32.totalorder %s45, 3
      %p248 = por %p246, %p247
      %p250 = scmp.ne.s32.totalorder %s233, %s249
      %p251 = scmp.eq.s32.totalorder %s45, 0
      %p252 = por %p250, %p251
      %s253 = ssub.s32 %s46, %s58
      %s254 = ssub.s32 %s47, %s54
      %s255 = sor.u32 %s253, %s254
      %p256 = scmp.eq.s32.totalorder %s255, 0
      %s258 = sadd.s32 %s257, 1
      %s259 = scalar_select %p256, %s257, %s258
      %p262 = pneg %p256
      %p263 = scmp.eq.s32.totalorder %s39, 3
      %p264 = por %p262, %p263
      %p265 = scmp.ne.s32.totalorder %s257, %s260
      %p266 = scmp.eq.s32.totalorder %s39, 0
      %p267 = por %p265, %p266
      %p268 = scmp.ne.s32.totalorder %s257, %s260
      %p269 = scmp.eq.s32.totalorder %s44, 3
      %p270 = por %p268, %p269
      %p271 = scmp.ne.s32.totalorder %s260, %s261
      %p272 = scmp.eq.s32.totalorder %s44, 0
      %p273 = por %p271, %p272
      %p274 = scmp.ne.s32.totalorder %s260, %s261
      %p275 = scmp.eq.s32.totalorder %s45, 3
      %p276 = por %p274, %p275
      %p278 = scmp.ne.s32.totalorder %s261, %s277
      %p279 = scmp.eq.s32.totalorder %s45, 0
      %p280 = por %p278, %p279
      %s281 = smul.u32 %s46, 2
      %s282 = sadd.s32 %s281, %s47
      %s283 = smul.u32 %s58, 2
      %s284 = sadd.s32 %s283, %s54
      %s285 = ssub.s32 %s282, %s284
      %p286 = scmp.eq.s32.totalorder %s285, 0
      %s288 = sadd.s32 %s287, 1
      %s289 = scalar_select %p286, %s287, %s288
      %p292 = pneg %p286
      %p293 = scmp.eq.s32.totalorder %s39, 3
      %p294 = por %p292, %p293
      %p295 = scmp.ne.s32.totalorder %s287, %s290
      %p296 = scmp.eq.s32.totalorder %s39, 0
      %p297 = por %p295, %p296
      %p298 = scmp.ne.s32.totalorder %s287, %s290
      %p299 = scmp.eq.s32.totalorder %s44, 3
      %p300 = por %p298, %p299
      %p301 = scmp.ne.s32.totalorder %s290, %s291
      %p302 = scmp.eq.s32.totalorder %s44, 0
      %p303 = por %p301, %p302
      %p304 = scmp.ne.s32.totalorder %s290, %s291
      %p305 = scmp.eq.s32.totalorder %s45, 3
      %p306 = por %p304, %p305
      %p308 = scmp.ne.s32.totalorder %s291, %s307
      %p309 = scmp.eq.s32.totalorder %s45, 0
      %p310 = por %p308, %p309
      %p311 = scmp.le.s32.totalorder 1, %s39
      %p312 = scmp.lt.s32.totalorder %s39, 5
      %p313 = pnand %p311, %p312
      %p314 = pneg %p313
      // Predicated region
      $region9: #{tpu_custom_call.1} parent=5 // pred_check
        _
      $region10: #{tpu_custom_call.1} parent=5 // pred_check_branch
        %316 = sbr.rel (%p313) target = $region12
      $region11: #{tpu_custom_call.1} parent=5 // pred_region
        %s317 = ssub.s32 %s39, 1
      $region12: #{tpu_custom_call.1} parent=5 // pred_fallthru
        _
      %p318 = scmp.lt.s32.totalorder %s39, 4
      // Predicated region
      $region13: #{tpu_custom_call.1} parent=5 // pred_check
        %p319 = pneg %p318
      $region14: #{tpu_custom_call.1} parent=5 // pred_check_branch
        %321 = sbr.rel (%p319) target = $region16
      $region15: #{tpu_custom_call.1} parent=5 // pred_region
        // Predicated region
        $region17: #{tpu_custom_call.1} parent=15 // pred_check
          %p322 = pneg %p73
        $region18: #{tpu_custom_call.1} parent=15 // pred_check_branch
          %324 = sbr.rel (%p322) target = $region20
        $region19: #{tpu_custom_call.1} parent=15 // pred_region
          %s325 = sand.u32 %s63, 1
          %s326 = scalar_lea.sflag [#allocation5], %s325
          %s327 = sand.u32 %s63, 1
          %s328 = smul.addr %s327, 4
          %s329 = scalar_lea.vmem [#allocation4], %s328
          %331 = vsyncadd %s326, 0
          %s332 = smul.addr %s46, 2
          %s333 = sadd.s32 %s47, %s332
          %s334 = smul.addr %s333, 4
          %s335 = scalar_lea.hbm %s1, %s334
          %s337 = sshll.u32 %s335, 4
          %s338 = int_to_ptr.hbm [resolvable:$true] %s337
          %s339 = sshll.u32 %s329, 4
          %s340 = int_to_ptr.vmem [resolvable:$true] %s339
          %342 = dma.hbm_to_vmem [thread:$0]  %s338, 64, %s340, %s326
        $region20: #{tpu_custom_call.1} parent=15 // pred_fallthru
          _
        // Predicated region
        $region21: #{tpu_custom_call.1} parent=15 // pred_check
          %p343 = pneg %p101
        $region22: #{tpu_custom_call.1} parent=15 // pred_check_branch
          %345 = sbr.rel (%p343) target = $region24
        $region23: #{tpu_custom_call.1} parent=15 // pred_region
          %s346 = sand.u32 %s39, 1
          %s347 = scalar_lea.sflag [#allocation8], %s346
          %s348 = sand.u32 %s91, 1
          %s349 = smul.addr %s348, 4
          %s350 = scalar_lea.vmem [#allocation7], %s349
          %352 = vsyncadd %s347, 0
          %s353 = smul.addr %s46, 2
          %s354 = sadd.s32 %s47, %s353
          %s355 = smul.addr %s354, 4
          %s356 = scalar_lea.hbm %s2, %s355
          %s358 = sshll.u32 %s356, 4
          %s359 = int_to_ptr.hbm [resolvable:$true] %s358
          %s360 = sshll.u32 %s350, 4
          %s361 = int_to_ptr.vmem [resolvable:$true] %s360
          %363 = dma.hbm_to_vmem [thread:$0]  %s359, 64, %s361, %s347
        $region24: #{tpu_custom_call.1} parent=15 // pred_fallthru
          _
        // Predicated region
        $region25: #{tpu_custom_call.1} parent=15 // pred_check
          %p364 = pneg %p129
        $region26: #{tpu_custom_call.1} parent=15 // pred_check_branch
          %366 = sbr.rel (%p364) target = $region28
        $region27: #{tpu_custom_call.1} parent=15 // pred_region
          %s367 = sand.u32 %s39, 1
          %s368 = scalar_lea.sflag [#allocation8], %s367
          %s369 = sand.u32 %s119, 1
          %s370 = scalar_lea.vmem [#allocation9], %s369
          %372 = vsyncadd %s368, 0
          %s373 = smul.addr %s46, 2
          %s374 = sadd.s32 %s47, %s373
          %s375 = scalar_lea.hbm %s3, %s374
          %s377 = sshll.u32 %s375, 4
          %s378 = int_to_ptr.hbm [resolvable:$true] %s377
          %s379 = sshll.u32 %s370, 4
          %s380 = int_to_ptr.vmem [resolvable:$true] %s379
          %382 = dma.hbm_to_vmem [thread:$0]  %s378, 16, %s380, %s368
        $region28: #{tpu_custom_call.1} parent=15 // pred_fallthru
          _
        // Predicated region
        $region29: #{tpu_custom_call.1} parent=15 // pred_check
          %p383 = pneg %p155
        $region30: #{tpu_custom_call.1} parent=15 // pred_check_branch
          %385 = sbr.rel (%p383) target = $region32
        $region31: #{tpu_custom_call.1} parent=15 // pred_region
          %s386 = sand.u32 %s145, 1
          %s387 = scalar_lea.sflag [#allocation11], %s386
          %s388 = sand.u32 %s145, 1
          %s389 = smul.addr %s388, 4
          %s390 = scalar_lea.vmem [#allocation10], %s389
          %392 = vsyncadd %s387, 0
          %s393 = smul.addr %s47, 4
          %s394 = scalar_lea.hbm %s4, %s393
          %s396 = sshll.u32 %s394, 4
          %s397 = int_to_ptr.hbm [resolvable:$true] %s396
          %s398 = sshll.u32 %s390, 4
          %s399 = int_to_ptr.vmem [resolvable:$true] %s398
          %401 = dma.hbm_to_vmem [thread:$0]  %s397, 64, %s399, %s387
        $region32: #{tpu_custom_call.1} parent=15 // pred_fallthru
          _
      $region16: #{tpu_custom_call.1} parent=5 // pred_fallthru
        _
      %p402 = scmp.le.s32.totalorder 1, %s39
      %p403 = scmp.lt.s32.totalorder %s39, 5
      %p404 = pnand %p402, %p403
      %p405 = pneg %p404
      // Predicated region
      $region33: #{tpu_custom_call.1} parent=5 // pred_check
        _
      $region34: #{tpu_custom_call.1} parent=5 // pred_check_branch
        %407 = sbr.rel (%p404) target = $region36
      $region35: #{tpu_custom_call.1} parent=5 // pred_region
        %s408 = ssub.s32 %s39, 1
        %s409 = sand.u32 %s66, 1
        %s410 = scalar_lea.sflag [#allocation5], %s409
        %s411 = sand.u32 %s66, 1
        %s412 = smul.addr %s411, 4
        %s413 = scalar_lea.vmem [#allocation4], %s412
        // Predicated region
        $region37: #{tpu_custom_call.1} parent=35 // pred_check
          %p414 = pneg %p79
        $region38: #{tpu_custom_call.1} parent=35 // pred_check_branch
          %416 = sbr.rel (%p414) target = $region40
        $region39: #{tpu_custom_call.1} parent=35 // pred_region
          %418 = dma.done %s410, 64
        $region40: #{tpu_custom_call.1} parent=35 // pred_fallthru
          _
        %s419 = sand.u32 %s44, 1
        %s420 = scalar_lea.sflag [#allocation8], %s419
        %s421 = sand.u32 %s94, 1
        %s422 = smul.addr %s421, 4
        %s423 = scalar_lea.vmem [#allocation7], %s422
        // Predicated region
        $region41: #{tpu_custom_call.1} parent=35 // pred_check
          %p424 = pneg %p107
        $region42: #{tpu_custom_call.1} parent=35 // pred_check_branch
          %426 = sbr.rel (%p424) target = $region44
        $region43: #{tpu_custom_call.1} parent=35 // pred_region
          %428 = dma.done %s420, 64
        $region44: #{tpu_custom_call.1} parent=35 // pred_fallthru
          _
        %s429 = sand.u32 %s44, 1
        %s430 = scalar_lea.sflag [#allocation8], %s429
        %s431 = sand.u32 %s122, 1
        %s432 = scalar_lea.vmem [#allocation9], %s431
        // Predicated region
        $region45: #{tpu_custom_call.1} parent=35 // pred_check
          %p433 = pneg %p135
        $region46: #{tpu_custom_call.1} parent=35 // pred_check_branch
          %435 = sbr.rel (%p433) target = $region48
        $region47: #{tpu_custom_call.1} parent=35 // pred_region
          %437 = dma.done %s430, 16
        $region48: #{tpu_custom_call.1} parent=35 // pred_fallthru
          _
        %s438 = sand.u32 %s148, 1
        %s439 = scalar_lea.sflag [#allocation11], %s438
        %s440 = sand.u32 %s148, 1
        %s441 = smul.addr %s440, 4
        %s442 = scalar_lea.vmem [#allocation10], %s441
        // Predicated region
        $region49: #{tpu_custom_call.1} parent=35 // pred_check
          %p443 = pneg %p161
        $region50: #{tpu_custom_call.1} parent=35 // pred_check_branch
          %445 = sbr.rel (%p443) target = $region52
        $region51: #{tpu_custom_call.1} parent=35 // pred_region
          %447 = dma.done %s439, 64
        $region52: #{tpu_custom_call.1} parent=35 // pred_fallthru
          _
        %s448 = sand.u32 %s66, 1
        %s449 = scalar_lea.sflag [#allocation5], %s448
        %s450 = sand.u32 %s66, 1
        %s451 = smul.addr %s450, 4
        %s452 = scalar_lea.vmem [#allocation4], %s451
        %p453 = pneg %p79
        %p454 = pneg %p76
        %s455 = sand.u32 %s44, 1
        %s456 = scalar_lea.sflag [#allocation8], %s455
        %s457 = sand.u32 %s94, 1
        %s458 = smul.addr %s457, 4
        %s459 = scalar_lea.vmem [#allocation7], %s458
        %p460 = pneg %p107
        %p461 = pneg %p104
        %s462 = sand.u32 %s44, 1
        %s463 = scalar_lea.sflag [#allocation8], %s462
        %s464 = sand.u32 %s122, 1
        %s465 = scalar_lea.vmem [#allocation9], %s464
        %p466 = pneg %p135
        %p467 = pneg %p132
        %s468 = sand.u32 %s148, 1
        %s469 = scalar_lea.sflag [#allocation11], %s468
        %s470 = sand.u32 %s148, 1
        %s471 = smul.addr %s470, 4
        %s472 = scalar_lea.vmem [#allocation10], %s471
        %p473 = pneg %p161
        %p474 = pneg %p158
        %p475 = pneg %p189
        %p476 = pneg %p186
        %s477 = sand.u32 %s176, 1
        %s478 = scalar_lea.sflag [#allocation6], %s477
        %s479 = sand.u32 %s176, 1
        %s480 = smul.addr %s479, 4
        %s481 = scalar_lea.vmem [#allocation12], %s480
        %p482 = pneg %p217
        %p483 = pneg %p214
        %s484 = sand.u32 %s44, 1
        %s485 = scalar_lea.sflag [#allocation14], %s484
        %s486 = sand.u32 %s204, 1
        %s487 = smul.addr %s486, 4
        %s488 = scalar_lea.vmem [#allocation13], %s487
        %p489 = pneg %p245
        %p490 = pneg %p242
        %s491 = sand.u32 %s44, 1
        %s492 = scalar_lea.sflag [#allocation14], %s491
        %s493 = sand.u32 %s232, 1
        %s494 = scalar_lea.vmem [#allocation15], %s493
        %p495 = pneg %p273
        %p496 = pneg %p270
        %p497 = scmp.lt.s32.totalorder %s48, 1
        %s498 = scalar_select %p497, %s48, 1
        %p499 = scmp.lt.s32.totalorder %s49, 1
        %s500 = scalar_select %p499, %s49, 1
        %s501 = smul.addr %s498, 2
        %s502 = sadd.s32 %s500, %s501
        %s503 = scalar_lea.vmem %s8, %s502
        %p504 = pneg %p303
        %p505 = pneg %p300
        %s506 = smul.u32 %s48, 2
        %s507 = sadd.s32 %s506, %s49
        %p508 = scmp.lt.s32.totalorder %s507, 3
        %s509 = scalar_select %p508, %s507, 3
        %s510 = scalar_lea.vmem %s9, %s509
        %p511 = scmp.lt.s32.totalorder %s48, 1
        %s512 = scalar_select %p511, %s48, 1
        %p513 = scmp.lt.s32.totalorder %s49, 1
        %s514 = scalar_select %p513, %s49, 1
        %s515 = smul.addr %s512, 2
        %s516 = sadd.s32 %s514, %s515
        %s517 = scalar_lea.vmem %s8, %s516
        %s518 = smul.u32 %s48, 2
        %s519 = sadd.s32 %s518, %s49
        %p520 = scmp.lt.s32.totalorder %s519, 3
        %s521 = scalar_select %p520, %s519, 3
        %s522 = scalar_lea.vmem %s9, %s521
        %s523 = smul.u32 %s48, 2
        %s524 = sadd.s32 %s523, %s49
        %v527 = vlaneseq
        %v528 = vand.u32 %v527, 127
        %s529 = smul.u32 %s49, 128
        %v530 = vstv %s529
        %v531 = vadd.s32 %v530, %v528
        %vm532 = vcmp.lt.s32.totalorder %v531, 192
        %v533 = vld [vmem:[%s413] sm:$0xf]
        %v534 = vld [vmem:[%s432] sm:$0x1]
        %vm535 = vcmp.gt.f32.partialorder %v533, -0.84729785
        %v536 = vsel %vm532, 1, 0
        %vm537 = vcmp.eq.s32.totalorder %v536, 1
        %vm538 = vmand %vm535, %vm537
        %vm539 = vmpackc.low %vm538, %vm538
        %v540 = vsel %vm539, 16711935, 0
        %v541 = vsel %vm539, 16711935, 0
        %v542 = vpack.c.b8 %v541, %v540
        %vm543 = vnez %v542
        %v544 = vsel %vm543, 16843009, 0
        %545 = vst [vmem:[%s494] sm:$0x1] %v544
        %v546 = vsub.f32 0.0, %v533
        %v547 = vmul.f32 %v546, 1.442695
        %v548 = vpow.pop %v547
        %v549 = vadd.f32 %v548, 1.0
        %v550 = vsub.f32 0.0, %v534
        %v551 = vmul.f32 %v550, 1.442695
        %v552 = vpow.pop %v551
        %v553 = vadd.f32 %v552, 1.0
        %v555 = vperm.slane %v553, 0
        %v557 = vmul.f32 %v549, %v555
        %v558 = vrsqrt.pop %v557
        %v559 = vmul.f32 %v558, %v557
        %v560 = vmul.f32 %v559, %v558
        %v561 = vmul.f32 0.5, %v560
        %v562 = vsub.f32 1.5, %v561
        %v563 = vmul.f32 %v558, %v562
        %vm564 = vweird.f32 %v557
        %vm565 = vweird.f32 %v558
        %vm566 = vmor %vm564, %vm565
        %v567 = vsel %vm566, %v558, %v563
        %v568 = vsel %vm537, %v567, 0.0
        %569 = vst [vmem:[%s481] sm:$0xf] %v568
        %v570 = vsel %vm538, 1, 0
        %vm571 = vcmask 1043456
        %v572 = vsel %vm571, %v570, 0
        %v573 = vand.u32 %v572, 65535
        %v574 = vshrl.u32 %v572, 16
        %v575 = vcvt.s32.f32 %v573
        %v576 = vcvt.s32.f32 %v574
        %577 = vadd.xlane.f32.xlu0 %v575
        %v578 = vpop.xlane.xlu0 %577
        %579 = vadd.xlane.f32.xlu0 %v576
        %v580 = vpop.xlane.xlu0 %579
        %v581 = vcvt.f32.s32 %v578
        %v582 = vcvt.f32.s32 %v580
        %v583 = vshll.u32 %v582, 16
        %v584 = vadd.s32 %v583, %v581
        %v585 = vrot.slane %v584, 4
        %v586 = vadd.s32 %v584, %v585
        %v587 = vrot.slane %v586, 2
        %v588 = vadd.s32 %v586, %v587
        %v589 = vrot.slane %v588, 1
        %v590 = vadd.s32 %v588, %v589
        %s591 = vtos %v590
        %v592 = vstv %s591
        %vm593 = vcmask 0
        %594 = vst.msk [vmem:[%s522] sm:$0x1] %vm593, %v592
        %v595 = vld [vmem:[%s423] sm:$0xf]
        %v596 = vld [vmem:[%s442] sm:$0xf]
        %v597 = vlaneseq
        %v598 = vshrl.u32 %v597, 7
        %vm599 = vcmp.lt.s32.totalorder %v598, 2
        %v600 = vsel %vm599, -1.0, 1.0
        %s601 = smul.u32 %s48, 128
        %s602 = sld [smem:[#allocation3 + %s601]]
        %s603 = scvt.s32.f32 %s602
        %s604 = sadd.s32 %s601, 1
        %s605 = sld [smem:[#allocation3 + %s604]]
        %s606 = scvt.s32.f32 %s605
        %vm607 = vcmp.lt.s32.totalorder %v598, 0
        %v608 = vsub.s32 0, %v598
        %v609 = vsel %vm607, %v608, %v598
        %v610 = vshrl.u32 %v609, 1
        %v611 = vand.u32 %v609, 1
        %v612 = vsub.s32 0, %v611
        %v613 = vsel %vm607, %v612, %v611
        %vm614 = vcmp.ne.s32.totalorder %v613, 0
        %vm615 = vcmp.lt.s32.totalorder %v613, 0
        %vm616 = vmand %vm615, %vm614
        %v617 = vadd.s32 %v613, 2
        %v618 = vsel %vm616, %v617, %v613
        %vm619 = vcmp.eq.s32.totalorder %v618, 0
        %s620 = ssub.f32 %s606, 1.0
        %s621 = ssub.f32 %s603, 1.0
        %v622 = vstv %s620
        %v623 = vstv %s621
        %v624 = vsel %vm619, %v622, %v623
        %v625 = vmul.f32 %v600, %v595
        %v626 = vadd.f32 %v596, %v625
        %v627 = vmax.f32 %v626, 0.0
        %v628 = vmin.f32 %v624, %v627
        %v629 = vsel %vm537, %v628, 0.0
        %630 = vst [vmem:[%s488] sm:$0xf] %v629
        %v632 = vrot.slane %v629, 6
        %vm634 = vcmp.gt.f32.partialorder %v629, %v632
        %v635 = vsel %vm634, 1, 0
        %v636 = vrot.slane %v635, 7
        %vm637 = vcmp.ne.s32.totalorder %v636, 0
        %vm638 = vmand %vm634, %vm637
        %v639 = vsub.f32 %v629, %v632
        %vm640 = vcmp.ge.f32.partialorder %v639, 0.0
        %v641 = vsel %vm640, 1, 0
        %v642 = vrot.slane %v641, 7
        %vm643 = vcmp.ne.s32.totalorder %v642, 0
        %vm644 = vmand %vm638, %vm643
        %vm645 = vmand %vm644, %vm640
        %vm646 = vmand %vm645, %vm532
        %vm647 = vmpackc.low %vm646, %vm646
        %v648 = vsel %vm647, 16711935, 0
        %v649 = vsel %vm647, 16711935, 0
        %v650 = vpack.c.b8 %v649, %v648
        %vm651 = vnez %v650
        %v652 = vsel %vm651, 16843009, 0
        %v653 = vunpack.c.0.s8 %v652
        %v654 = vpack.c.b16 %v653, %v653
        %v655 = vpack.c.b8 %v654, %v654
        %v657 = vshrl.u32 %v655, 24
        %vm659 = vnez %v657
        %v660 = vsel %vm659, 16843009, 0
        %vm661 = vcmask 1040384
        %vm662 = vsmask.f32 0
        %vm663 = vmand %vm661, %vm662
        %v664 = vld [vmem:[%s517] sm:$0x1]
        %v665 = vsel %vm663, %v660, %v664
        %666 = vst [vmem:[%s517] sm:$0x1] %v665
        %s667 = sand.u32 %s176, 1
        %s668 = scalar_lea.sflag [#allocation6], %s667
        %s669 = sand.u32 %s176, 1
        %s670 = smul.addr %s669, 4
        %s671 = scalar_lea.vmem [#allocation12], %s670
        %s672 = sand.u32 %s44, 1
        %s673 = scalar_lea.sflag [#allocation14], %s672
        %s674 = sand.u32 %s204, 1
        %s675 = smul.addr %s674, 4
        %s676 = scalar_lea.vmem [#allocation13], %s675
        %s677 = sand.u32 %s44, 1
        %s678 = scalar_lea.sflag [#allocation14], %s677
        %s679 = sand.u32 %s232, 1
        %s680 = scalar_lea.vmem [#allocation15], %s679
        %p681 = scmp.lt.s32.totalorder %s48, 1
        %s682 = scalar_select %p681, %s48, 1
        %p683 = scmp.lt.s32.totalorder %s49, 1
        %s684 = scalar_select %p683, %s49, 1
        %s685 = smul.addr %s682, 2
        %s686 = sadd.s32 %s684, %s685
        %s687 = scalar_lea.vmem %s8, %s686
        %s688 = smul.u32 %s48, 2
        %s689 = sadd.s32 %s688, %s49
        %p690 = scmp.lt.s32.totalorder %s689, 3
        %s691 = scalar_select %p690, %s689, 3
        %s692 = scalar_lea.vmem %s9, %s691
        // Predicated region
        $region53: #{tpu_custom_call.1} parent=35 // pred_check
          %p693 = pneg %p186
        $region54: #{tpu_custom_call.1} parent=35 // pred_check_branch
          %695 = sbr.rel (%p693) target = $region56
        $region55: #{tpu_custom_call.1} parent=35 // pred_region
          %697 = vsyncadd %s668, 0
          %s698 = smul.addr %s48, 2
          %s699 = sadd.s32 %s49, %s698
          %s700 = smul.addr %s699, 4
          %s701 = scalar_lea.hbm %s5, %s700
          %s703 = sshll.u32 %s671, 4
          %s704 = int_to_ptr.vmem [resolvable:$true] %s703
          %s705 = sshll.u32 %s701, 4
          %s706 = int_to_ptr.hbm [resolvable:$true] %s705
          %708 = dma.vmem_to_hbm [thread:$0]  %s704, 64, %s706, %s668
        $region56: #{tpu_custom_call.1} parent=35 // pred_fallthru
          _
        // Predicated region
        $region57: #{tpu_custom_call.1} parent=35 // pred_check
          %p709 = pneg %p214
        $region58: #{tpu_custom_call.1} parent=35 // pred_check_branch
          %711 = sbr.rel (%p709) target = $region60
        $region59: #{tpu_custom_call.1} parent=35 // pred_region
          %713 = vsyncadd %s673, 0
          %s714 = smul.addr %s48, 2
          %s715 = sadd.s32 %s49, %s714
          %s716 = smul.addr %s715, 4
          %s717 = scalar_lea.hbm %s6, %s716
          %s719 = sshll.u32 %s676, 4
          %s720 = int_to_ptr.vmem [resolvable:$true] %s719
          %s721 = sshll.u32 %s717, 4
          %s722 = int_to_ptr.hbm [resolvable:$true] %s721
          %724 = dma.vmem_to_hbm [thread:$0]  %s720, 64, %s722, %s673
        $region60: #{tpu_custom_call.1} parent=35 // pred_fallthru
          _
        // Predicated region
        $region61: #{tpu_custom_call.1} parent=35 // pred_check
          %p725 = pneg %p242
        $region62: #{tpu_custom_call.1} parent=35 // pred_check_branch
          %727 = sbr.rel (%p725) target = $region64
        $region63: #{tpu_custom_call.1} parent=35 // pred_region
          %729 = vsyncadd %s678, 0
          %s730 = smul.addr %s48, 2
          %s731 = sadd.s32 %s49, %s730
          %s732 = scalar_lea.hbm %s7, %s731
          %s734 = sshll.u32 %s680, 4
          %s735 = int_to_ptr.vmem [resolvable:$true] %s734
          %s736 = sshll.u32 %s732, 4
          %s737 = int_to_ptr.hbm [resolvable:$true] %s736
          %739 = dma.vmem_to_hbm [thread:$0]  %s735, 16, %s737, %s678
        $region64: #{tpu_custom_call.1} parent=35 // pred_fallthru
          _
        // Predicated region
        $region65: #{tpu_custom_call.1} parent=35 // pred_check
          %p740 = pneg %p270
        $region66: #{tpu_custom_call.1} parent=35 // pred_check_branch
          %742 = sbr.rel (%p740) target = $region68
        $region67: #{tpu_custom_call.1} parent=35 // pred_region
          _
        $region68: #{tpu_custom_call.1} parent=35 // pred_fallthru
          _
        // Predicated region
        $region69: #{tpu_custom_call.1} parent=35 // pred_check
          %p743 = pneg %p300
        $region70: #{tpu_custom_call.1} parent=35 // pred_check_branch
          %745 = sbr.rel (%p743) target = $region72
        $region71: #{tpu_custom_call.1} parent=35 // pred_region
          %s746 = smul.u32 %s48, 2
          %s747 = sadd.s32 %s746, %s49
        $region72: #{tpu_custom_call.1} parent=35 // pred_fallthru
          _
      $region36: #{tpu_custom_call.1} parent=5 // pred_fallthru
        _
      %p748 = scmp.le.s32.totalorder 2, %s39
      // Predicated region
      $region73: #{tpu_custom_call.1} parent=5 // pred_check
        %p749 = pneg %p748
      $region74: #{tpu_custom_call.1} parent=5 // pred_check_branch
        %751 = sbr.rel (%p749) target = $region76
      $region75: #{tpu_custom_call.1} parent=5 // pred_region
        %s752 = ssub.s32 %s39, 2
        // Predicated region
        $region77: #{tpu_custom_call.1} parent=75 // pred_check
          %p753 = pneg %p192
        $region78: #{tpu_custom_call.1} parent=75 // pred_check_branch
          %755 = sbr.rel (%p753) target = $region80
        $region79: #{tpu_custom_call.1} parent=75 // pred_region
          %s756 = sand.u32 %s177, 1
          %s757 = scalar_lea.sflag [#allocation6], %s756
          %s758 = sand.u32 %s177, 1
          %s759 = smul.addr %s758, 4
          %s760 = scalar_lea.vmem [#allocation12], %s759
          %762 = dma.done %s757, 64
        $region80: #{tpu_custom_call.1} parent=75 // pred_fallthru
          _
        // Predicated region
        $region81: #{tpu_custom_call.1} parent=75 // pred_check
          %p763 = pneg %p220
        $region82: #{tpu_custom_call.1} parent=75 // pred_check_branch
          %765 = sbr.rel (%p763) target = $region84
        $region83: #{tpu_custom_call.1} parent=75 // pred_region
          %s766 = sand.u32 %s45, 1
          %s767 = scalar_lea.sflag [#allocation14], %s766
          %s768 = sand.u32 %s205, 1
          %s769 = smul.addr %s768, 4
          %s770 = scalar_lea.vmem [#allocation13], %s769
          %772 = dma.done %s767, 64
        $region84: #{tpu_custom_call.1} parent=75 // pred_fallthru
          _
        // Predicated region
        $region85: #{tpu_custom_call.1} parent=75 // pred_check
          %p773 = pneg %p248
        $region86: #{tpu_custom_call.1} parent=75 // pred_check_branch
          %775 = sbr.rel (%p773) target = $region88
        $region87: #{tpu_custom_call.1} parent=75 // pred_region
          %s776 = sand.u32 %s45, 1
          %s777 = scalar_lea.sflag [#allocation14], %s776
          %s778 = sand.u32 %s233, 1
          %s779 = scalar_lea.vmem [#allocation15], %s778
          %781 = dma.done %s777, 16
        $region88: #{tpu_custom_call.1} parent=75 // pred_fallthru
          _
        // Predicated region
        $region89: #{tpu_custom_call.1} parent=75 // pred_check
          %p782 = pneg %p276
        $region90: #{tpu_custom_call.1} parent=75 // pred_check_branch
          %784 = sbr.rel (%p782) target = $region92
        $region91: #{tpu_custom_call.1} parent=75 // pred_region
          %p785 = scmp.lt.s32.totalorder %s50, 1
          %s786 = scalar_select %p785, %s50, 1
          %p787 = scmp.lt.s32.totalorder %s51, 1
          %s788 = scalar_select %p787, %s51, 1
          %s789 = smul.addr %s786, 2
          %s790 = sadd.s32 %s788, %s789
          %s791 = scalar_lea.vmem %s8, %s790
        $region92: #{tpu_custom_call.1} parent=75 // pred_fallthru
          _
        // Predicated region
        $region93: #{tpu_custom_call.1} parent=75 // pred_check
          %p792 = pneg %p306
        $region94: #{tpu_custom_call.1} parent=75 // pred_check_branch
          %794 = sbr.rel (%p792) target = $region96
        $region95: #{tpu_custom_call.1} parent=75 // pred_region
          %s795 = smul.u32 %s50, 2
          %s796 = sadd.s32 %s795, %s51
          %p797 = scmp.lt.s32.totalorder %s796, 3
          %s798 = scalar_select %p797, %s796, 3
          %s799 = scalar_lea.vmem %s9, %s798
        $region96: #{tpu_custom_call.1} parent=75 // pred_fallthru
          _
      $region76: #{tpu_custom_call.1} parent=5 // pred_fallthru
        _
    $region6: #{tpu_custom_call.1} parent=1 // loop_footer
      %s43 = sadd.s32 1, %s39
    $region7: #{tpu_custom_call.1} parent=1 // loop_footer_branch
      %38 = sbr.rel target = $region3
    $region8: #{tpu_custom_call.1} parent=1 // loop_exit
      _
    %800 = vsyncpa [#allocation5], 1
    %s801 = scalar_lea.sflag [#allocation5], 1
    %802 = vsyncpa %s801, 1
    %803 = vsyncpa [#allocation8], 1
    %s804 = scalar_lea.sflag [#allocation8], 1
    %805 = vsyncpa %s804, 1
    %806 = vsyncpa [#allocation11], 1
    %s807 = scalar_lea.sflag [#allocation11], 1
    %808 = vsyncpa %s807, 1
    %809 = vsyncpa [#allocation6], 1
    %s810 = scalar_lea.sflag [#allocation6], 1
    %811 = vsyncpa %s810, 1
    %812 = vsyncpa [#allocation14], 1
    %s813 = scalar_lea.sflag [#allocation14], 1
    %814 = vsyncpa %s813, 1

</llo_original>
